<compile_context>
chip_gen: v7x
topology: tpu7x:2x2x1
jax: 0.10.0
libtpu: 0.0.40
codegen_flags: <defaults>
</compile_context>

<pallas_src>
import functools

import jax
import jax.numpy as jnp
from jax.experimental import pallas as pl
from jax.experimental.pallas import tpu as pltpu


def _round_up(x, m):
    return ((x + m - 1) // m) * m


def _tpu_generation():
    try:
        kind = jax.devices()[0].device_kind.lower()
    except Exception:
        return "unknown"
    if "v6" in kind:
        return "v6e"
    if "7" in kind:                      # "tpu7x" / "tpu v7x"
        return "v7x"
    if "v5" in kind and ("lite" in kind or "5e" in kind):
        return "v5e"
    return "unknown"


def _vmem_footprint(tm, tk, h_pad, weight_bytes):
    """Rough VMEM bytes for one row tile at (tm, tk)."""
    x_io = 2 * tm * h_pad * 4            # f32 x tile, double-buffered
    out_io = 2 * tm * h_pad * 4          # f32 output tile, double-buffered
    acc = tm * h_pad * 4                 # f32 accumulator scratch
    xbf = tm * h_pad * 2                 # bf16 x copy scratch
    hmat = tm * tk * (4 + 2)             # materialized ReLU intermediate (f32 + bf16)
    return x_io + out_io + acc + xbf + hmat + weight_bytes


def _intermediate_kernel(x_ref, w_in_ref, b_in_ref, w_out_ref, b_out_ref,
                         gamma_ref, beta_ref, o_ref, acc_ref, xbf_ref,
                         *, h_real, h_pad, eps):
    k = pl.program_id(1)

    @pl.when(k == 0)
    def _():
        acc_ref[...] = jnp.zeros_like(acc_ref)
        # Hoisted cast: once per row tile, reused for every I-chunk.
        xbf_ref[...] = x_ref[...].astype(jnp.bfloat16)

    # --- FFN over one I-chunk: acc += ReLU(x @ W_in[:,k] + b_in[k]) @ W_out[k,:]
    # bf16 MXU inputs, f32 accumulation (ReLU is elementwise over I, so chunking
    # the intermediate dimension is exact).
    h = jnp.dot(xbf_ref[...], w_in_ref[...], preferred_element_type=jnp.float32)
    h = jnp.maximum(h + b_in_ref[...], 0.0)
    acc_ref[...] += jnp.dot(h.astype(jnp.bfloat16), w_out_ref[...],
                            preferred_element_type=jnp.float32)

    # --- epilogue on last I-chunk: out bias, dropout(identity), residual, LayerNorm
    # TODO(synk): dropout implemented as identity (inference mode).
    @pl.when(k == pl.num_programs(1) - 1)
    def _():
        x = x_ref[...].astype(jnp.float32)
        z = acc_ref[...] + b_out_ref[...] + x          # residual uses original f32 x
        # Pad columns of z are exactly 0 (zero-padded weights/biases/x), so the
        # reductions below are exact for the real H columns.
        u = jnp.sum(z, axis=-1, keepdims=True) * (1.0 / h_real)
        d = z - u
        ss = jnp.sum(d * d, axis=-1, keepdims=True)
        if h_pad != h_real:
            # pad columns contribute (h_pad - h_real) * u^2 to ss; remove exactly.
            ss = ss - float(h_pad - h_real) * (u * u)
        s = ss * (1.0 / h_real)
        zn = d * jax.lax.rsqrt(s + eps)                # TF-style: eps inside sqrt
        o_ref[...] = (gamma_ref[...] * zn + beta_ref[...]).astype(o_ref.dtype)


def intermediate_forward(x, w_in, b_in, w_out, b_out, gamma, beta,
                         *, tm=None, tk=512, eps=1e-12):
    """x: [B, S, H] float32. W_in [H, I], W_out [I, H]. Returns [B, S, H]."""
    B, S, H = x.shape
    I = w_in.shape[1]
    M = B * S

    # ---- per-generation targets (roofline: AI = tm FLOPs per weight byte) ------
    gen = _tpu_generation()
    if gen == "v6e":
        tm_target, vmem_limit = 1024, 100 * 1024 * 1024   # 128 MiB physical
    elif gen == "v5e":
        tm_target, vmem_limit = 512, 96 * 1024 * 1024     # 128 MiB physical
    elif gen == "v7x":
        tm_target, vmem_limit = 512, 52 * 1024 * 1024     # 64 MiB physical per TC
    else:
        tm_target, vmem_limit = 512, 48 * 1024 * 1024     # conservative fallback
    if tm is not None:
        tm_target = tm
    budget = vmem_limit - 4 * 1024 * 1024                 # slack for biases/sems

    H_pad = _round_up(H, 128)                             # lane-dense output stores
    tm_eff = min(tm_target, _round_up(M, 8))              # multiple of 8 sublane rows

    # ---- weight-resident fast path vs I-chunked path ---------------------------
    # bf16 weights, x2 for double-buffered allocation of the (constant-index) blocks.
    resident_w_bytes = 2 * 2 * (H_pad * I * 2)
    use_fast, tm_fast = False, tm_eff
    while True:
        if _vmem_footprint(tm_fast, I, H_pad, resident_w_bytes) <= budget:
            use_fast = True
            break
        if tm_fast <= 128:
            break
        tm_fast = max(128, _round_up(tm_fast // 2, 8))

    if use_fast:
        # Single I-chunk; W_in/W_out block index is constant across the whole grid,
        # so they are DMA'd once and stay VMEM-resident across all row tiles.
        tm_eff, tk_eff, I_pad = tm_fast, I, I
    else:
        tk_eff = min(tk, _round_up(I, 128))
        tk_eff = max(128, (tk_eff // 128) * 128)          # lane-aligned chunk
        I_pad = _round_up(I, tk_eff)
        chunk_w_bytes = 2 * 2 * (H_pad * tk_eff * 2)
        while tm_eff > 128 and _vmem_footprint(tm_eff, tk_eff, H_pad,
                                               chunk_w_bytes) > budget:
            tm_eff = max(128, _round_up(tm_eff // 2, 8))

    grid_m = pl.cdiv(M, tm_eff)
    if gen == "v7x" and grid_m > 1 and grid_m % 2 == 1:
        # Best-effort: even number of row tiles so both TensorCores stay busy.
        grid_m += 1
        tm_eff = max(8, _round_up(-(-M // grid_m), 8))
        grid_m = pl.cdiv(M, tm_eff)
    M_pad = grid_m * tm_eff
    grid = (grid_m, I_pad // tk_eff)                      # (parallel rows, arbitrary I)

    # ---- pad / flatten / cast ---------------------------------------------------
    x2 = x.reshape(M, H)
    if M_pad != M or H_pad != H:
        # zero pad rows/cols: exact (pad rows sliced off; pad cols stay exactly 0)
        x2 = jnp.pad(x2, ((0, M_pad - M), (0, H_pad - H)))

    w_in_p = jnp.pad(w_in, ((0, H_pad - H), (0, I_pad - I)))
    b_in_p = jnp.pad(b_in, (0, I_pad - I))
    w_out_p = jnp.pad(w_out, ((0, I_pad - I), (0, H_pad - H)))
    b_out_p = jnp.pad(b_out, (0, H_pad - H))
    gamma_p = jnp.pad(gamma, (0, H_pad - H))
    beta_p = jnp.pad(beta, (0, H_pad - H))

    w_in_bf = w_in_p.astype(jnp.bfloat16)                 # bf16 weights in HBM
    w_out_bf = w_out_p.astype(jnp.bfloat16)
    b_in2 = b_in_p.reshape(1, I_pad)
    b_out2 = b_out_p.reshape(1, H_pad)
    gamma2 = gamma_p.reshape(1, H_pad)
    beta2 = beta_p.reshape(1, H_pad)

    kernel = functools.partial(_intermediate_kernel,
                               h_real=H, h_pad=H_pad, eps=eps)

    out2 = pl.pallas_call(
        kernel,
        out_shape=jax.ShapeDtypeStruct((M_pad, H_pad), x.dtype),
        grid_spec=pltpu.PrefetchScalarGridSpec(
            num_scalar_prefetch=0,
            grid=grid,
            in_specs=[
                pl.BlockSpec((tm_eff, H_pad), lambda i, k: (i, 0)),   # x row tile
                pl.BlockSpec((H_pad, tk_eff), lambda i, k: (0, k)),   # W_in chunk
                pl.BlockSpec((1, tk_eff), lambda i, k: (0, k)),       # b_in chunk
                pl.BlockSpec((tk_eff, H_pad), lambda i, k: (k, 0)),   # W_out chunk
                pl.BlockSpec((1, H_pad), lambda i, k: (0, 0)),        # b_out
                pl.BlockSpec((1, H_pad), lambda i, k: (0, 0)),        # gamma
                pl.BlockSpec((1, H_pad), lambda i, k: (0, 0)),        # beta
            ],
            out_specs=pl.BlockSpec((tm_eff, H_pad), lambda i, k: (i, 0)),
            scratch_shapes=[
                pltpu.VMEM((tm_eff, H_pad), jnp.float32),    # f32 accumulator
                pltpu.VMEM((tm_eff, H_pad), jnp.bfloat16),   # hoisted bf16 x copy
            ],
        ),
        compiler_params=pltpu.CompilerParams(
            dimension_semantics=("parallel", "arbitrary"),
            vmem_limit_bytes=vmem_limit,
        ),
    )(x2, w_in_bf, b_in2, w_out_bf, b_out2, gamma2, beta2)

    return out2[:M, :H].reshape(B, S, H)


def _reference(x, w_in, b_in, w_out, b_out, gamma, beta):
    h = jnp.maximum(x @ w_in + b_in, 0.0)
    y = h @ w_out + b_out
    z = y + x
    u = jnp.mean(z, axis=-1, keepdims=True)
    s = jnp.mean((z - u) ** 2, axis=-1, keepdims=True)
    zn = (z - u) / jnp.sqrt(s + 1e-12)
    return gamma * zn + beta


if __name__ == "__main__":
    key = jax.random.PRNGKey(0)
    B, S, H, I = 2, 8, 32, 64      # hidden_size=32, intermediate_size=64

    k1, k2, k3, k4, k5 = jax.random.split(key, 5)
    x = jax.random.normal(k1, (B, S, H), dtype=jnp.float32)

    # deterministic parameter init (Linear: weight [in, out] here, bias [out])
    w_in = jax.random.normal(k2, (H, I), dtype=jnp.float32) * (1.0 / jnp.sqrt(H))
    b_in = jax.random.normal(k3, (I,), dtype=jnp.float32) * 0.01
    w_out = jax.random.normal(k4, (I, H), dtype=jnp.float32) * (1.0 / jnp.sqrt(I))
    b_out = jax.random.normal(k5, (H,), dtype=jnp.float32) * 0.01
    gamma = jnp.ones((H,), dtype=jnp.float32)
    beta = jnp.zeros((H,), dtype=jnp.float32)

    out = intermediate_forward(x, w_in, b_in, w_out, b_out, gamma, beta)
    out = jax.block_until_ready(out)

    ref = _reference(x, w_in, b_in, w_out, b_out, gamma, beta)
    assert out.shape == (B, S, H)
    # bf16 MXU inputs with f32 accumulation -> compare vs pure-f32 reference
    # at bf16-appropriate tolerance (LayerNorm reductions stay f32 in-kernel).
    assert jnp.allclose(out, ref, atol=5e-2, rtol=5e-2), "mismatch vs reference"

    print("KERNEL_OK")
</pallas_src>

<mosaic_0001>
module attributes {stable_mosaic.version = 11 : i64} {
  func.func @_intermediate_kernel(%arg0: i32, %arg1: i32, %arg2: memref<16x128xf32, #tpu.memory_space<vmem>>, %arg3: memref<128x64xbf16, #tpu.memory_space<vmem>>, %arg4: memref<1x64xf32, #tpu.memory_space<vmem>>, %arg5: memref<64x128xbf16, #tpu.memory_space<vmem>>, %arg6: memref<1x128xf32, #tpu.memory_space<vmem>>, %arg7: memref<1x128xf32, #tpu.memory_space<vmem>>, %arg8: memref<1x128xf32, #tpu.memory_space<vmem>>, %arg9: memref<16x128xf32, #tpu.memory_space<vmem>>, %arg10: memref<16x128xf32, #tpu.memory_space<vmem>>, %arg11: memref<16x128xbf16, #tpu.memory_space<vmem>>) attributes {dimension_semantics = [#tpu.dimension_semantics<parallel>, #tpu.dimension_semantics<arbitrary>], iteration_bounds = array<i64: 1, 1>, scalar_prefetch = 0 : i64, scratch_operands = 2 : i64, tpu.core_type = #tpu.core_type<tc>, window_params = [{transform_indices = @transform_0, window_bounds = array<i64: 16, 128>}, {transform_indices = @transform_1, window_bounds = array<i64: 128, 64>}, {transform_indices = @transform_2, window_bounds = array<i64: 1, 64>}, {transform_indices = @transform_3, window_bounds = array<i64: 64, 128>}, {pipeline_mode = #tpu.pipeline_mode<synchronous>, transform_indices = @transform_4, window_bounds = array<i64: 1, 128>}, {pipeline_mode = #tpu.pipeline_mode<synchronous>, transform_indices = @transform_5, window_bounds = array<i64: 1, 128>}, {pipeline_mode = #tpu.pipeline_mode<synchronous>, transform_indices = @transform_6, window_bounds = array<i64: 1, 128>}, {transform_indices = @transform_7, window_bounds = array<i64: 16, 128>}]} {
    %c0_i32 = arith.constant 0 : i32
    %0 = arith.cmpi eq, %arg1, %c0_i32 : i32
    %1 = arith.extui %0 : i1 to i32
    %c0_i32_0 = arith.constant 0 : i32
    %2 = arith.cmpi ne, %1, %c0_i32_0 : i32
    scf.if %2 {
      %cst_16 = arith.constant 0.000000e+00 : f32
      %20 = vector.broadcast %cst_16 : f32 to vector<16x128xf32>
      %c0_17 = arith.constant 0 : index
      %c0_18 = arith.constant 0 : index
      %21 = vector.load %arg10[%c0_17, %c0_18] : memref<16x128xf32, #tpu.memory_space<vmem>>, vector<16x128xf32>
      tpu.vector_store %arg10[%c0_17, %c0_18], %20 {strides = array<i32>} : memref<16x128xf32, #tpu.memory_space<vmem>>, vector<16x128xf32>,
      %c0_19 = arith.constant 0 : index
      %c0_20 = arith.constant 0 : index
      %22 = vector.load %arg2[%c0_19, %c0_20] : memref<16x128xf32, #tpu.memory_space<vmem>>, vector<16x128xf32>
      %23 = arith.truncf %22 : vector<16x128xf32> to vector<16x128xbf16>
      %c0_21 = arith.constant 0 : index
      %c0_22 = arith.constant 0 : index
      %24 = vector.load %arg11[%c0_21, %c0_22] : memref<16x128xbf16, #tpu.memory_space<vmem>>, vector<16x128xbf16>
      tpu.vector_store %arg11[%c0_21, %c0_22], %23 {strides = array<i32>} : memref<16x128xbf16, #tpu.memory_space<vmem>>, vector<16x128xbf16>,
    } else {
    }
    %c0 = arith.constant 0 : index
    %c0_1 = arith.constant 0 : index
    %3 = vector.load %arg11[%c0, %c0_1] : memref<16x128xbf16, #tpu.memory_space<vmem>>, vector<16x128xbf16>
    %c0_2 = arith.constant 0 : index
    %c0_3 = arith.constant 0 : index
    %4 = vector.load %arg3[%c0_2, %c0_3] : memref<128x64xbf16, #tpu.memory_space<vmem>>, vector<128x64xbf16>
    %cst = arith.constant dense<0.000000e+00> : vector<16x64xf32>
    %5 = tpu.matmul %3, %4, %cst {dimension_numbers = #tpu.dot_dimension_numbers<[1], [0], [0], [1], [0, 0, 1, 1], [], []>} : vector<16x128xbf16>, vector<128x64xbf16>, vector<16x64xf32> -> vector<16x64xf32>
    %c0_4 = arith.constant 0 : index
    %c0_5 = arith.constant 0 : index
    %6 = vector.load %arg4[%c0_4, %c0_5] : memref<1x64xf32, #tpu.memory_space<vmem>>, vector<1x64xf32>
    %7 = vector.broadcast %6 : vector<1x64xf32> to vector<16x64xf32>
    %8 = arith.addf %5, %7 : vector<16x64xf32>
    %cst_6 = arith.constant 0.000000e+00 : f32
    %9 = vector.broadcast %cst_6 : f32 to vector<16x64xf32>
    %10 = arith.maximumf %8, %9 : vector<16x64xf32>
    %c0_7 = arith.constant 0 : index
    %c0_8 = arith.constant 0 : index
    %11 = vector.load %arg10[%c0_7, %c0_8] : memref<16x128xf32, #tpu.memory_space<vmem>>, vector<16x128xf32>
    %12 = arith.truncf %10 : vector<16x64xf32> to vector<16x64xbf16>
    %c0_9 = arith.constant 0 : index
    %c0_10 = arith.constant 0 : index
    %13 = vector.load %arg5[%c0_9, %c0_10] : memref<64x128xbf16, #tpu.memory_space<vmem>>, vector<64x128xbf16>
    %cst_11 = arith.constant dense<0.000000e+00> : vector<16x128xf32>
    %14 = tpu.matmul %12, %13, %cst_11 {dimension_numbers = #tpu.dot_dimension_numbers<[1], [0], [0], [1], [0, 0, 1, 1], [], []>} : vector<16x64xbf16>, vector<64x128xbf16>, vector<16x128xf32> -> vector<16x128xf32>
    %15 = arith.addf %11, %14 : vector<16x128xf32>
    %c0_12 = arith.constant 0 : index
    %c0_13 = arith.constant 0 : index
    %16 = vector.load %arg10[%c0_12, %c0_13] : memref<16x128xf32, #tpu.memory_space<vmem>>, vector<16x128xf32>
    tpu.vector_store %arg10[%c0_12, %c0_13], %15 {strides = array<i32>} : memref<16x128xf32, #tpu.memory_space<vmem>>, vector<16x128xf32>,
    %c0_i32_14 = arith.constant 0 : i32
    %17 = arith.cmpi eq, %arg1, %c0_i32_14 : i32
    %18 = arith.extui %17 : i1 to i32
    %c0_i32_15 = arith.constant 0 : i32
    %19 = arith.cmpi ne, %18, %c0_i32_15 : i32
    scf.if %19 {
      %c0_16 = arith.constant 0 : index
      %c0_17 = arith.constant 0 : index
      %20 = vector.load %arg2[%c0_16, %c0_17] : memref<16x128xf32, #tpu.memory_space<vmem>>, vector<16x128xf32>
      %c0_18 = arith.constant 0 : index
      %c0_19 = arith.constant 0 : index
      %21 = vector.load %arg10[%c0_18, %c0_19] : memref<16x128xf32, #tpu.memory_space<vmem>>, vector<16x128xf32>
      %c0_20 = arith.constant 0 : index
      %c0_21 = arith.constant 0 : index
      %22 = vector.load %arg6[%c0_20, %c0_21] : memref<1x128xf32, #tpu.memory_space<vmem>>, vector<1x128xf32>
      %23 = vector.broadcast %22 : vector<1x128xf32> to vector<16x128xf32>
      %24 = arith.addf %21, %23 : vector<16x128xf32>
      %25 = arith.addf %24, %20 : vector<16x128xf32>
      %cst_22 = arith.constant dense<0.000000e+00> : vector<16xf32>
      %26 = vector.multi_reduction <add>, %25, %cst_22 [1] : vector<16x128xf32> to vector<16xf32>
      %27 = vector.shape_cast %26 : vector<16xf32> to vector<16x1xf32>
      %cst_23 = arith.constant 3.125000e-02 : f32
      %28 = vector.broadcast %cst_23 : f32 to vector<16x1xf32>
      %29 = arith.mulf %27, %28 : vector<16x1xf32>
      %30 = vector.broadcast %29 : vector<16x1xf32> to vector<16x128xf32>
      %31 = arith.subf %25, %30 : vector<16x128xf32>
      %32 = arith.mulf %31, %31 : vector<16x128xf32>
      %cst_24 = arith.constant dense<0.000000e+00> : vector<16xf32>
      %33 = vector.multi_reduction <add>, %32, %cst_24 [1] : vector<16x128xf32> to vector<16xf32>
      %34 = vector.shape_cast %33 : vector<16xf32> to vector<16x1xf32>
      %35 = arith.mulf %29, %29 : vector<16x1xf32>
      %cst_25 = arith.constant 9.600000e+01 : f32
      %36 = vector.broadcast %cst_25 : f32 to vector<16x1xf32>
      %37 = arith.mulf %36, %35 : vector<16x1xf32>
      %38 = arith.subf %34, %37 : vector<16x1xf32>
      %cst_26 = arith.constant 3.125000e-02 : f32
      %39 = vector.broadcast %cst_26 : f32 to vector<16x1xf32>
      %40 = arith.mulf %38, %39 : vector<16x1xf32>
      %cst_27 = arith.constant 9.99999996E-13 : f32
      %41 = vector.broadcast %cst_27 : f32 to vector<16x1xf32>
      %42 = arith.addf %40, %41 : vector<16x1xf32>
      %43 = math.rsqrt %42 : vector<16x1xf32>
      %44 = vector.broadcast %43 : vector<16x1xf32> to vector<16x128xf32>
      %45 = arith.mulf %31, %44 : vector<16x128xf32>
      %c0_28 = arith.constant 0 : index
      %c0_29 = arith.constant 0 : index
      %46 = vector.load %arg7[%c0_28, %c0_29] : memref<1x128xf32, #tpu.memory_space<vmem>>, vector<1x128xf32>
      %47 = vector.broadcast %46 : vector<1x128xf32> to vector<16x128xf32>
      %48 = arith.mulf %47, %45 : vector<16x128xf32>
      %c0_30 = arith.constant 0 : index
      %c0_31 = arith.constant 0 : index
      %49 = vector.load %arg8[%c0_30, %c0_31] : memref<1x128xf32, #tpu.memory_space<vmem>>, vector<1x128xf32>
      %50 = vector.broadcast %49 : vector<1x128xf32> to vector<16x128xf32>
      %51 = arith.addf %48, %50 : vector<16x128xf32>
      %c0_32 = arith.constant 0 : index
      %c0_33 = arith.constant 0 : index
      %52 = vector.load %arg9[%c0_32, %c0_33] : memref<16x128xf32, #tpu.memory_space<vmem>>, vector<16x128xf32>
      tpu.vector_store %arg9[%c0_32, %c0_33], %51 {strides = array<i32>} : memref<16x128xf32, #tpu.memory_space<vmem>>, vector<16x128xf32>,
    } else {
    }
    return
  }
  func.func @transform_0(%arg0: i32, %arg1: i32) -> (i32, i32) {
    %c0_i32 = arith.constant 0 : i32
    %c0_i32_0 = arith.constant 0 : i32
    return %arg0, %c0_i32 : i32, i32
  }
  func.func @transform_1(%arg0: i32, %arg1: i32) -> (i32, i32) {
    %c0_i32 = arith.constant 0 : i32
    %c0_i32_0 = arith.constant 0 : i32
    return %c0_i32, %arg1 : i32, i32
  }
  func.func @transform_2(%arg0: i32, %arg1: i32) -> (i32, i32) {
    %c0_i32 = arith.constant 0 : i32
    %c0_i32_0 = arith.constant 0 : i32
    return %c0_i32, %arg1 : i32, i32
  }
  func.func @transform_3(%arg0: i32, %arg1: i32) -> (i32, i32) {
    %c0_i32 = arith.constant 0 : i32
    %c0_i32_0 = arith.constant 0 : i32
    return %arg1, %c0_i32 : i32, i32
  }
  func.func @transform_4(%arg0: i32, %arg1: i32) -> (i32, i32) {
    %c0_i32 = arith.constant 0 : i32
    %c0_i32_0 = arith.constant 0 : i32
    %c0_i32_1 = arith.constant 0 : i32
    return %c0_i32, %c0_i32_0 : i32, i32
  }
  func.func @transform_5(%arg0: i32, %arg1: i32) -> (i32, i32) {
    %c0_i32 = arith.constant 0 : i32
    %c0_i32_0 = arith.constant 0 : i32
    %c0_i32_1 = arith.constant 0 : i32
    return %c0_i32, %c0_i32_0 : i32, i32
  }
  func.func @transform_6(%arg0: i32, %arg1: i32) -> (i32, i32) {
    %c0_i32 = arith.constant 0 : i32
    %c0_i32_0 = arith.constant 0 : i32
    %c0_i32_1 = arith.constant 0 : i32
    return %c0_i32, %c0_i32_0 : i32, i32
  }
  func.func @transform_7(%arg0: i32, %arg1: i32) -> (i32, i32) {
    %c0_i32 = arith.constant 0 : i32
    %c0_i32_0 = arith.constant 0 : i32
    return %arg0, %c0_i32 : i32, i32
  }
}

</mosaic_0001>

<llo_original>
// kernel: tpu_custom_call.1
$region0: #{tpu_custom_call.1}
  #allocation0 [shape = 'u32[]', space=smem, size = 0x4, offset = 0x4, fixed_abs, tag = 'smem constant byte address 0x4 - core index']
  #allocation1 [shape = 'u32[144,128]{1,0:T(1,128)}', space=vmem, size = 0x12000, scoped, tag = 'internal scratch']
  #allocation2 [shape = 'f32[16,128]{1,0:T(8,128)}', space=vmem, size = 0x2000, scoped, tag = 'scratch operand']
  #allocation3 [shape = 'bf16[16,128]{1,0:T(16,128)(2,1)}', space=vmem, size = 0x1000, scoped, tag = 'scratch operand']
  %s0 = inlined_call_operand.vmem [shape: f32[16,128], index: 0, kind: input, shape index: {}]
  %s1 = inlined_call_operand.vmem [shape: bf16[128,64], index: 1, kind: input, shape index: {}]
  %s2 = inlined_call_operand.vmem [shape: f32[1,64], index: 2, kind: input, shape index: {}]
  %s3 = inlined_call_operand.vmem [shape: bf16[64,128], index: 3, kind: input, shape index: {}]
  %s4 = inlined_call_operand.vmem [shape: f32[1,128], index: 4, kind: input, shape index: {}]
  %s5 = inlined_call_operand.vmem [shape: f32[1,128], index: 5, kind: input, shape index: {}]
  %s6 = inlined_call_operand.vmem [shape: f32[1,128], index: 6, kind: input, shape index: {}]
  %s7 = inlined_call_operand.hbm [shape: f32[16,128], index: 7, kind: output, shape index: {}]
  %s8 = sld [smem:[#allocation0]]
  $region46: #{tpu_custom_call.1} parent=0
    _
  %s10 = ssub.s32 1, %s8
  %s11 = scalar_select 0, %s10, %s8
  $region1: #{tpu_custom_call.1} parent=0
    #allocation4 [shape = 'u8[8192]{0}', space=vmem, size = 0x2000, scoped, tag = 'output window, operand 0, single buffered']
    #allocation5 [shape = 's32[1]{0}', space=sflag, size = 0x4, scoped, tag = 'scoped memory for tpu_custom_call.1']
    %12 = vsyncpa [#allocation5], 0
    // Predicated region
    $region2: #{tpu_custom_call.1} parent=1 // pred_check
      _
    $region3: #{tpu_custom_call.1} parent=1 // pred_check_branch
      %14 = sbr.rel (0) target = $region5
    $region4: #{tpu_custom_call.1} parent=1 // pred_region
      _
    $region5: #{tpu_custom_call.1} parent=1 // pred_fallthru
      _
    // Predicated region
    $region6: #{tpu_custom_call.1} parent=1 // pred_check
      _
    $region7: #{tpu_custom_call.1} parent=1 // pred_check_branch
      %16 = sbr.rel (0) target = $region9
    $region8: #{tpu_custom_call.1} parent=1 // pred_region
      _
    $region9: #{tpu_custom_call.1} parent=1 // pred_fallthru
      _
    // Predicated region
    $region10: #{tpu_custom_call.1} parent=1 // pred_check
      _
    $region11: #{tpu_custom_call.1} parent=1 // pred_check_branch
      %18 = sbr.rel (0) target = $region13
    $region12: #{tpu_custom_call.1} parent=1 // pred_region
      _
    $region13: #{tpu_custom_call.1} parent=1 // pred_fallthru
      _
    // Predicated region
    $region14: #{tpu_custom_call.1} parent=1 // pred_check
      _
    $region15: #{tpu_custom_call.1} parent=1 // pred_check_branch
      %20 = sbr.rel (0) target = $region17
    $region16: #{tpu_custom_call.1} parent=1 // pred_region
      _
    $region17: #{tpu_custom_call.1} parent=1 // pred_fallthru
      _
    // Predicated region
    $region18: #{tpu_custom_call.1} parent=1 // pred_check
      _
    $region19: #{tpu_custom_call.1} parent=1 // pred_check_branch
      %22 = sbr.rel (0) target = $region21
    $region20: #{tpu_custom_call.1} parent=1 // pred_region
      _
    $region21: #{tpu_custom_call.1} parent=1 // pred_fallthru
      _
    // Predicated region
    $region22: #{tpu_custom_call.1} parent=1 // pred_check
      _
    $region23: #{tpu_custom_call.1} parent=1 // pred_check_branch
      %24 = sbr.rel (0) target = $region25
    $region24: #{tpu_custom_call.1} parent=1 // pred_region
      _
    $region25: #{tpu_custom_call.1} parent=1 // pred_fallthru
      _
    // Predicated region
    $region26: #{tpu_custom_call.1} parent=1 // pred_check
      _
    $region27: #{tpu_custom_call.1} parent=1 // pred_check_branch
      %26 = sbr.rel (0) target = $region29
    $region28: #{tpu_custom_call.1} parent=1 // pred_region
      _
    $region29: #{tpu_custom_call.1} parent=1 // pred_fallthru
      _
    %p28 = scmp.eq.s32.totalorder 0, 0
    // Predicated region
    $region30: #{tpu_custom_call.1} parent=1 // pred_check
      %p29 = pneg %p28
    $region31: #{tpu_custom_call.1} parent=1 // pred_check_branch
      %31 = sbr.rel (%p29) target = $region33
    $region32: #{tpu_custom_call.1} parent=1 // pred_region
      %32 = vst [vmem:[#allocation2] sm:$0xff] 0.0
      %33 = vst [vmem:[#allocation2 + $0x8] sm:$0xff] 0.0
      %v34 = vld [vmem:[%s0] sm:$0xff]
      %v35 = vld [vmem:[%s0 + $0x8] sm:$0xff]
      %v36 = vpack.c.bf16 %v35, %v34
      %37 = vst [vmem:[#allocation3] sm:$0xff] %v36
    $region33: #{tpu_custom_call.1} parent=1 // pred_fallthru
      _
    %v38 = vld [vmem:[#allocation3] sm:$0xff]
    %v39 = vld [vmem:[%s1] sm:$0xf]
    %v40 = vld [vmem:[%s1 + $0x4] sm:$0xf]
    %v41 = vld [vmem:[%s1 + $0x8] sm:$0xf]
    %v42 = vld [vmem:[%s1 + $0xc] sm:$0xf]
    %v43 = vld [vmem:[%s1 + $0x10] sm:$0xf]
    %v44 = vld [vmem:[%s1 + $0x14] sm:$0xf]
    %v45 = vld [vmem:[%s1 + $0x18] sm:$0xf]
    %v46 = vld [vmem:[%s1 + $0x1c] sm:$0xf]
    %v47 = vld [vmem:[%s1 + $0x20] sm:$0xf]
    %v48 = vld [vmem:[%s1 + $0x24] sm:$0xf]
    %v49 = vld [vmem:[%s1 + $0x28] sm:$0xf]
    %v50 = vld [vmem:[%s1 + $0x2c] sm:$0xf]
    %v51 = vld [vmem:[%s1 + $0x30] sm:$0xf]
    %v52 = vld [vmem:[%s1 + $0x34] sm:$0xf]
    %v53 = vld [vmem:[%s1 + $0x38] sm:$0xf]
    %v54 = vld [vmem:[%s1 + $0x3c] sm:$0xf]
    %v55 = vld [vmem:[%s2] sm:$0x1]
    %v57 = vlaneseq
    %v58 = vshrl.u32 %v57, 7
    %v59 = vsub.s32 0, %v58
    %v60 = vrot.slane %v55, %v59
    %v78 = vunpack.c.l.b16 %v39
    %v79 = vunpack.c.l.b16 %v40
    %v80 = vunpack.c.l.b16 %v41
    %v81 = vunpack.c.l.b16 %v42
    %v82 = vunpack.c.l.b16 %v43
    %v83 = vunpack.c.l.b16 %v44
    %v84 = vunpack.c.l.b16 %v45
    %v85 = vunpack.c.l.b16 %v46
    %v86 = vunpack.c.l.b16 %v47
    %v87 = vunpack.c.l.b16 %v48
    %v88 = vunpack.c.l.b16 %v49
    %v89 = vunpack.c.l.b16 %v50
    %v90 = vunpack.c.l.b16 %v51
    %v91 = vunpack.c.l.b16 %v52
    %v92 = vunpack.c.l.b16 %v53
    %v93 = vunpack.c.l.b16 %v54
    %v94 = vpack.c.b16 %v79, %v78
    %v95 = vpack.c.b16 %v81, %v80
    %v96 = vpack.c.b16 %v83, %v82
    %v97 = vpack.c.b16 %v85, %v84
    %v98 = vpack.c.b16 %v87, %v86
    %v99 = vpack.c.b16 %v89, %v88
    %v100 = vpack.c.b16 %v91, %v90
    %v101 = vpack.c.b16 %v93, %v92
    %110 = vmatprep.subr.bf16.mxu0 0
    %111 = vmatpush1.bf16.msra.mxu0 %v94
    %112 = vmatprep.subr.bf16.mxu0 0
    %113 = vmatpush1.bf16.msra.mxu0 %v95
    %114 = vmatprep.subr.bf16.mxu0 0
    %115 = vmatpush1.bf16.msra.mxu0 %v96
    %116 = vmatprep.subr.bf16.mxu0 0
    %117 = vmatpush1.bf16.msra.mxu0 %v97
    %118 = vmatprep.subr.bf16.mxu0 0
    %119 = vmatpush1.bf16.msra.mxu0 %v98
    %120 = vmatprep.subr.bf16.mxu0 0
    %121 = vmatpush1.bf16.msra.mxu0 %v99
    %122 = vmatprep.subr.bf16.mxu0 0
    %123 = vmatpush1.bf16.msra.mxu0 %v100
    %124 = vmatprep.subr.bf16.mxu0 0
    %125 = vmatpush1.bf16.msra.mxu0 %v101
    %126 = vmatprep.subr.bf16.mxu0 0
    %127 = vmatpush1.bf16.msra.mxu0 0
    %128 = vmatprep.subr.bf16.mxu0 0
    %129 = vmatpush1.bf16.msra.mxu0 0
    %130 = vmatprep.subr.bf16.mxu0 0
    %131 = vmatpush1.bf16.msra.mxu0 0
    %132 = vmatprep.subr.bf16.mxu0 0
    %133 = vmatpush1.bf16.msra.mxu0 0
    %134 = vmatprep.subr.bf16.mxu0 0
    %135 = vmatpush1.bf16.msra.mxu0 0
    %136 = vmatprep.subr.bf16.mxu0 0
    %137 = vmatpush1.bf16.msra.mxu0 0
    %138 = vmatprep.subr.bf16.mxu0 0
    %139 = vmatpush1.bf16.msra.mxu0 0
    %140 = vmatprep.subr.bf16.mxu0 0
    %141 = vmatpush1.bf16.msra.mxu0 0
    %142 = vmatprep.mubr.bf16.mxu0 0
    %143 = vmatmul.mubr.bf16.gmra.mrb[0].mxu0 %v38
    %v144 = vpop.f32.mrb[0].mxu0
    %v145 = vadd.f32 %v60, %v144
    %v146 = vpop.f32.mrb[0].mxu0
    %v147 = vpop.f32.mrb[0].mxu0
    %v148 = vadd.f32 %v60, %v147
    %v149 = vpop.f32.mrb[0].mxu0
    %150 = vdwg.mxu0
    %v151 = vmax.f32 %v145, 0.0
    %v152 = vmax.f32 %v148, 0.0
    %v153 = vld [vmem:[#allocation2] sm:$0xff]
    %v154 = vld [vmem:[#allocation2 + $0x8] sm:$0xff]
    %v155 = vpack.c.bf16 %v152, %v151
    %v156 = vld [vmem:[%s3] sm:$0xf]
    %v157 = vld [vmem:[%s3 + $0x4] sm:$0xf]
    %v158 = vld [vmem:[%s3 + $0x8] sm:$0xf]
    %v159 = vld [vmem:[%s3 + $0xc] sm:$0xf]
    %v160 = vld [vmem:[%s3 + $0x10] sm:$0xf]
    %v161 = vld [vmem:[%s3 + $0x14] sm:$0xf]
    %v162 = vld [vmem:[%s3 + $0x18] sm:$0xf]
    %v163 = vld [vmem:[%s3 + $0x1c] sm:$0xf]
    %v172 = vunpack.c.l.b16 %v156
    %v173 = vunpack.c.l.b16 %v157
    %v174 = vunpack.c.l.b16 %v158
    %v175 = vunpack.c.l.b16 %v159
    %v176 = vunpack.c.l.b16 %v160
    %v177 = vunpack.c.l.b16 %v161
    %v178 = vunpack.c.l.b16 %v162
    %v179 = vunpack.c.l.b16 %v163
    %v180 = vpack.c.b16 %v173, %v172
    %v181 = vpack.c.b16 %v175, %v174
    %v182 = vpack.c.b16 %v177, %v176
    %v183 = vpack.c.b16 %v179, %v178
    %vm188 = vcmask 523264
    %v190 = vsel %vm188, %v155, 0
    %192 = vmatprep.subr.bf16.mxu0 0
    %193 = vmatpush1.bf16.msra.mxu0 %v180
    %194 = vmatprep.subr.bf16.mxu0 0
    %195 = vmatpush1.bf16.msra.mxu0 %v181
    %196 = vmatprep.subr.bf16.mxu0 0
    %197 = vmatpush1.bf16.msra.mxu0 %v182
    %198 = vmatprep.subr.bf16.mxu0 0
    %199 = vmatpush1.bf16.msra.mxu0 %v183
    %200 = vmatprep.subr.bf16.mxu0 0
    %201 = vmatpush1.bf16.msra.mxu0 0
    %202 = vmatprep.subr.bf16.mxu0 0
    %203 = vmatpush1.bf16.msra.mxu0 0
    %204 = vmatprep.subr.bf16.mxu0 0
    %205 = vmatpush1.bf16.msra.mxu0 0
    %206 = vmatprep.subr.bf16.mxu0 0
    %207 = vmatpush1.bf16.msra.mxu0 0
    %208 = vmatprep.subr.bf16.mxu0 0
    %209 = vmatpush1.bf16.msra.mxu0 0
    %210 = vmatprep.subr.bf16.mxu0 0
    %211 = vmatpush1.bf16.msra.mxu0 0
    %212 = vmatprep.subr.bf16.mxu0 0
    %213 = vmatpush1.bf16.msra.mxu0 0
    %214 = vmatprep.subr.bf16.mxu0 0
    %215 = vmatpush1.bf16.msra.mxu0 0
    %216 = vmatprep.subr.bf16.mxu0 0
    %217 = vmatpush1.bf16.msra.mxu0 0
    %218 = vmatprep.subr.bf16.mxu0 0
    %219 = vmatpush1.bf16.msra.mxu0 0
    %220 = vmatprep.subr.bf16.mxu0 0
    %221 = vmatpush1.bf16.msra.mxu0 0
    %222 = vmatprep.subr.bf16.mxu0 0
    %223 = vmatpush1.bf16.msra.mxu0 0
    %224 = vmatprep.mubr.bf16.mxu0 0
    %225 = vmatmul.mubr.bf16.gmra.mrb[0].mxu0 %v190
    %v226 = vpop.f32.mrb[0].mxu0
    %v227 = vadd.f32 0.0, %v226
    %v228 = vpop.f32.mrb[0].mxu0
    %v229 = vpop.f32.mrb[0].mxu0
    %v230 = vadd.f32 0.0, %v229
    %v231 = vpop.f32.mrb[0].mxu0
    %232 = vdwg.mxu0
    %v233 = vadd.f32 %v153, %v227
    %v234 = vadd.f32 %v154, %v230
    %235 = vst [vmem:[#allocation2] sm:$0xff] %v233
    %236 = vst [vmem:[#allocation2 + $0x8] sm:$0xff] %v234
    // Predicated region
    $region34: #{tpu_custom_call.1} parent=1 // pred_check
      %p237 = pneg %p28
    $region35: #{tpu_custom_call.1} parent=1 // pred_check_branch
      %239 = sbr.rel (%p237) target = $region37
    $region36: #{tpu_custom_call.1} parent=1 // pred_region
      %v240 = vld [vmem:[%s0] sm:$0xff]
      %v241 = vld [vmem:[%s0 + $0x8] sm:$0xff]
      %v242 = vld [vmem:[#allocation2] sm:$0xff]
      %v243 = vld [vmem:[#allocation2 + $0x8] sm:$0xff]
      %v244 = vld [vmem:[%s4] sm:$0x1]
      %v246 = vlaneseq
      %v247 = vshrl.u32 %v246, 7
      %v248 = vsub.s32 0, %v247
      %v249 = vrot.slane %v244, %v248
      %v251 = vadd.f32 %v242, %v249
      %v252 = vadd.f32 %v243, %v249
      %v253 = vadd.f32 %v251, %v240
      %v254 = vadd.f32 %v252, %v241
      %255 = vadd.xlane.f32.xlu0 %v253
      %v256 = vpop.xlane.xlu0 %255
      %257 = vadd.xlane.f32.xlu0 %v254
      %v258 = vpop.xlane.xlu0 %257
      %v259 = vmul.f32 %v256, 0.03125
      %v260 = vmul.f32 %v258, 0.03125
      %v261 = vsub.f32 %v253, %v259
      %v262 = vsub.f32 %v254, %v260
      %v263 = vmul.f32 %v261, %v261
      %v264 = vmul.f32 %v262, %v262
      %265 = vadd.xlane.f32.xlu0 %v263
      %v266 = vpop.xlane.xlu0 %265
      %267 = vadd.xlane.f32.xlu0 %v264
      %v268 = vpop.xlane.xlu0 %267
      %v269 = vmul.f32 %v259, %v259
      %v270 = vmul.f32 %v260, %v260
      %v271 = vmul.f32 %v269, 96.0
      %v272 = vmul.f32 %v270, 96.0
      %v273 = vsub.f32 %v266, %v271
      %v274 = vsub.f32 %v268, %v272
      %v275 = vmul.f32 %v273, 0.03125
      %v276 = vmul.f32 %v274, 0.03125
      %v277 = vadd.f32 %v275, 1e-12
      %v278 = vadd.f32 %v276, 1e-12
      %v279 = vrsqrt.pop %v277
      %v280 = vrsqrt.pop %v278
      %v281 = vmul.f32 %v261, %v279
      %v282 = vmul.f32 %v262, %v280
      %v283 = vld [vmem:[%s5] sm:$0x1]
      %v285 = vlaneseq
      %v286 = vshrl.u32 %v285, 7
      %v287 = vsub.s32 0, %v286
      %v288 = vrot.slane %v283, %v287
      %v290 = vmul.f32 %v288, %v281
      %v291 = vmul.f32 %v288, %v282
      %v292 = vld [vmem:[%s6] sm:$0x1]
      %v294 = vlaneseq
      %v295 = vshrl.u32 %v294, 7
      %v296 = vsub.s32 0, %v295
      %v297 = vrot.slane %v292, %v296
      %v299 = vadd.f32 %v290, %v297
      %v300 = vadd.f32 %v291, %v297
      %301 = vst [vmem:[#allocation4] sm:$0xff] %v299
      %302 = vst [vmem:[#allocation4 + $0x8] sm:$0xff] %v300
    $region37: #{tpu_custom_call.1} parent=1 // pred_fallthru
      _
    // Predicated region
    $region38: #{tpu_custom_call.1} parent=1 // pred_check
      _
    $region39: #{tpu_custom_call.1} parent=1 // pred_check_branch
      %304 = sbr.rel (0) target = $region41
    $region40: #{tpu_custom_call.1} parent=1 // pred_region
      %s306 = ssub.s32 256, 256
      %307 = vsyncadd [#allocation5], %s306
      %s308 = sshll.u32 [#allocation4], 4
      %s309 = int_to_ptr.vmem [resolvable:$true] %s308
      %314 = dma.vmem_to_hbm [thread:$0]  %s309, 256, %s7, [#allocation5], 128, 128, 8
    $region41: #{tpu_custom_call.1} parent=1 // pred_fallthru
      _
    // Predicated region
    $region42: #{tpu_custom_call.1} parent=1 // pred_check
      _
    $region43: #{tpu_custom_call.1} parent=1 // pred_check_branch
      %316 = sbr.rel (0) target = $region45
    $region44: #{tpu_custom_call.1} parent=1 // pred_region
      %317 = dma.done [#allocation5], 256
    $region45: #{tpu_custom_call.1} parent=1 // pred_fallthru
      _
    %318 = vsyncpa [#allocation5], 1

</llo_original>
